<compile_context>
chip_gen: v6e
topology: v6e:2x2x1
jax: 0.10.0
libtpu: 0.0.40
codegen_flags: <defaults>
</compile_context>

<pallas_src>
import jax
import jax.numpy as jnp
from jax.experimental import pallas as pl
from jax.experimental.pallas import tpu as pltpu
import numpy as np


def dgm_kernel(gamma_ref, x1_ref, out_ref):
    # gamma_ref: (1, 1) f32 in SMEM
    # x1_ref:    (Bt, C, HWt) in VMEM (input dtype)
    # out_ref:   (Bt, C, HWt) in VMEM (input dtype)
    gamma = gamma_ref[0, 0]
    c = x1_ref.shape[1]
    scale = gamma * jnp.float32(1.0 / c)             # gamma * relation (== 1/C)

    # Channel reduction (XLU, sublane axis) in f32; consumed immediately so the
    # f32 upcast of the tile is never kept live (keeps vreg/VMEM pressure low
    # for bf16 inputs).
    ch_sum = jnp.sum(x1_ref[...].astype(jnp.float32), axis=1, keepdims=True)  # (Bt,1,HWt)
    add = (scale * ch_sum).astype(out_ref.dtype)     # (Bt,1,HWt) in store dtype

    # Residual: re-read the ref in native dtype; single broadcast FMA-ish add (VPU).
    out_ref[...] = (x1_ref[...] + add).astype(out_ref.dtype)


def _largest_divisor_at_most(n, cap):
    cap = max(1, min(n, cap))
    for d in range(cap, 0, -1):
        if n % d == 0:
            return d
    return 1


def _sublane_multiple(dtype):
    # f32 -> 8, bf16 -> 16, int8/fp8 -> 32 sublane packing.
    bits = jnp.dtype(dtype).itemsize * 8
    return max(8, 256 // bits)


def _chip_budgets():
    """(per-block padded-VMEM budget, scoped-VMEM default) for the local chip."""
    try:
        kind = jax.devices()[0].device_kind.lower()
    except Exception:
        kind = ""
    if ("v5 lite" in kind) or ("v5e" in kind) or ("v5lite" in kind):
        return 2 << 20, 16 << 20      # v5e: keep total footprint ~<= 10 MiB
    return 4 << 20, 32 << 20          # v6e / v7x (and safe on anything newer)


def _pick_tiles(B, c_pad, hw_pad, itemsize, block_budget):
    """Pick (batch_tile, lane_tile) for block (bt, C, hw_tile).

    Accounts for sublane padding of C; hw_pad is a multiple of 128 so every
    store is lane-dense/unmasked. Ensures >= 2 grid steps when splittable so
    v7x can shard across both TensorCores.
    """
    n_units = hw_pad // 128                       # 128-lane groups
    bytes_per_unit = c_pad * 128 * itemsize       # padded VMEM bytes per (1 batch, 128 lanes)

    max_units = max(1, block_budget // bytes_per_unit)
    u = _largest_divisor_at_most(n_units, max_units)
    max_bt = max(1, block_budget // (u * bytes_per_unit))
    bt = _largest_divisor_at_most(B, max_bt)

    # Keep at least 2 "parallel" grid steps (megacore) when the problem allows.
    while (B // bt) * (n_units // u) < 2:
        if u > 1:
            u = _largest_divisor_at_most(n_units, u - 1)
        elif bt > 1:
            bt = _largest_divisor_at_most(B, bt - 1)
        else:
            break
    return bt, u * 128


def dgm_forward(x1, x2, gamma, *, donate_x1=False):
    """x1: (B, C, H, W), x2: (B, 1, H, W), gamma: scalar parameter (shape (1,) ok).

    x2 is accepted for API parity with the PyTorch module but is not read: the
    module's output is mathematically independent of x2 for finite inputs.
    Set donate_x1=True only if the caller can donate x1's buffer (aliases the
    output onto it; avoids a second B*C*HW HBM allocation).
    """
    del x2  # exact identity: output does not depend on x2 (finite inputs)
    B, C, H, W = x1.shape
    HW = H * W
    itemsize = jnp.dtype(x1.dtype).itemsize

    # Keep the input dtype end-to-end; the kernel accumulates in f32 internally.
    x1_r = x1.reshape(B, C, HW)

    # Lane-dense layout: pad HW up to a multiple of 128 (unmasked vst), slice after.
    hw_pad = ((HW + 127) // 128) * 128
    if hw_pad != HW:
        x1_r = jnp.pad(x1_r, ((0, 0), (0, 0), (0, hw_pad - HW)))

    gamma_r = jnp.asarray(gamma, jnp.float32).reshape(1, 1)

    block_budget, scoped_default = _chip_budgets()
    c_pad = ((C + _sublane_multiple(x1.dtype) - 1)
             // _sublane_multiple(x1.dtype)) * _sublane_multiple(x1.dtype)
    bt, hw_tile = _pick_tiles(B, c_pad, hw_pad, itemsize, block_budget)

    # Real VMEM footprint: (in + out) x double-buffered blocks + f32 ch_sum temp
    # (sublane-padded to 8) + headroom; pass it explicitly so large-C / bf16
    # cases never hit a silent scoped-VMEM fallback.
    block_bytes = bt * c_pad * hw_tile * itemsize
    csum_bytes = bt * 8 * hw_tile * 4
    vmem_limit = max(int(4 * block_bytes + 2 * csum_bytes + (2 << 20)), scoped_default)

    cost = pl.CostEstimate(
        flops=2 * B * C * HW,              # channel-sum + broadcast FMA
        transcendentals=0,
        bytes_accessed=2 * B * C * HW * itemsize,
    )

    out = pl.pallas_call(
        dgm_kernel,
        out_shape=jax.ShapeDtypeStruct((B, C, hw_pad), x1.dtype),
        grid=(B // bt, hw_pad // hw_tile),
        in_specs=[
            pl.BlockSpec(memory_space=pltpu.MemorySpace.SMEM),          # gamma (1,1)
            pl.BlockSpec((bt, C, hw_tile), lambda b, h: (b, 0, h)),     # x1 tile
        ],
        out_specs=pl.BlockSpec((bt, C, hw_tile), lambda b, h: (b, 0, h)),
        compiler_params=pltpu.CompilerParams(
            dimension_semantics=("parallel", "parallel"),
            vmem_limit_bytes=vmem_limit),
        cost_estimate=cost,
        input_output_aliases=({1: 0} if donate_x1 else {}),
    )(gamma_r, x1_r)

    if hw_pad != HW:
        out = out[:, :, :HW]
    return out.reshape(B, C, H, W)


def dgm_reference(x1, x2, gamma):
    """Pure-JAX reference mirroring the PyTorch forward exactly (full path)."""
    B, C, H, W = x1.shape
    HW = H * W
    x2_cat = jnp.broadcast_to(x2, (B, C, H, W))            # torch.cat loop
    x1_view = x1.reshape(B, C, HW)
    x2_view = x2_cat.reshape(B, C, HW).transpose(0, 2, 1)
    energy = jnp.einsum('bij,bjk->bik', x1_view, x2_view)
    energy_new = jnp.max(energy, axis=-1, keepdims=True) - energy
    relation = jax.nn.softmax(energy_new, axis=-1)
    out = jnp.einsum('bij,bjk->bik', relation, x1_view).reshape(B, C, H, W)
    return gamma * out + x1


if __name__ == "__main__":
    # Parameter init matching DGM.__init__: gamma = zeros(1)
    gamma = jnp.zeros((1,), dtype=jnp.float32)

    key = jax.random.PRNGKey(0)
    k1, k2, k3, k4 = jax.random.split(key, 4)
    B, C, H, W = 2, 4, 16, 16
    x1 = jax.random.normal(k1, (B, C, H, W), dtype=jnp.float32)
    x2 = jax.random.normal(k2, (B, 1, H, W), dtype=jnp.float32)

    out = jax.block_until_ready(dgm_forward(x1, x2, gamma))
    ref = dgm_reference(x1, x2, gamma[0])
    assert np.allclose(np.asarray(out), np.asarray(ref), rtol=1e-3, atol=1e-3)

    # Non-zero gamma exercises the attention/mean path, not just the residual.
    gamma_nz = jnp.full((1,), 0.5, dtype=jnp.float32)
    out_nz = jax.block_until_ready(dgm_forward(x1, x2, gamma_nz))
    ref_nz = dgm_reference(x1, x2, gamma_nz[0])
    assert np.allclose(np.asarray(out_nz), np.asarray(ref_nz), rtol=1e-3, atol=1e-3)

    # Non-128-aligned spatial size exercises the lane-padding path.
    Ho, Wo = 5, 6
    x1o = jax.random.normal(k3, (B, C, Ho, Wo), dtype=jnp.float32)
    x2o = jax.random.normal(k4, (B, 1, Ho, Wo), dtype=jnp.float32)
    out_o = jax.block_until_ready(dgm_forward(x1o, x2o, gamma_nz))
    ref_o = dgm_reference(x1o, x2o, gamma_nz[0])
    assert np.allclose(np.asarray(out_o), np.asarray(ref_o), rtol=1e-3, atol=1e-3)

    print("KERNEL_OK")
</pallas_src>

<mosaic_0001>
module attributes {stable_mosaic.version = 11 : i64} {
  func.func @dgm_kernel(%arg0: i32, %arg1: i32, %arg2: memref<1x1xf32, #tpu.memory_space<smem>>, %arg3: memref<2x4x128xf32, #tpu.memory_space<vmem>>, %arg4: memref<2x4x128xf32, #tpu.memory_space<vmem>>) attributes {dimension_semantics = [#tpu.dimension_semantics<parallel>, #tpu.dimension_semantics<parallel>], iteration_bounds = array<i64: 1, 2>, scalar_prefetch = 0 : i64, scratch_operands = 0 : i64, tpu.core_type = #tpu.core_type<tc>, window_params = [{transform_indices = @transform_0, window_bounds = array<i64: 1, 1>}, {transform_indices = @transform_1, window_bounds = array<i64: 2, 4, 128>}, {transform_indices = @transform_2, window_bounds = array<i64: 2, 4, 128>}]} {
    %c0 = arith.constant 0 : index
    %c0_0 = arith.constant 0 : index
    %0 = memref.load %arg2[%c0, %c0_0] : memref<1x1xf32, #tpu.memory_space<smem>>
    %cst = arith.constant 2.500000e-01 : f32
    %1 = arith.mulf %0, %cst : f32
    %c0_1 = arith.constant 0 : index
    %c0_2 = arith.constant 0 : index
    %c0_3 = arith.constant 0 : index
    %2 = vector.load %arg3[%c0_1, %c0_2, %c0_3] : memref<2x4x128xf32, #tpu.memory_space<vmem>>, vector<2x4x128xf32>
    %cst_4 = arith.constant dense<0.000000e+00> : vector<2x128xf32>
    %3 = vector.multi_reduction <add>, %2, %cst_4 [1] : vector<2x4x128xf32> to vector<2x128xf32>
    %4 = vector.shape_cast %3 : vector<2x128xf32> to vector<2x1x128xf32>
    %5 = vector.broadcast %1 : f32 to vector<2x1x128xf32>
    %6 = arith.mulf %5, %4 : vector<2x1x128xf32>
    %c0_5 = arith.constant 0 : index
    %c0_6 = arith.constant 0 : index
    %c0_7 = arith.constant 0 : index
    %7 = vector.load %arg3[%c0_5, %c0_6, %c0_7] : memref<2x4x128xf32, #tpu.memory_space<vmem>>, vector<2x4x128xf32>
    %8 = vector.broadcast %6 : vector<2x1x128xf32> to vector<2x4x128xf32>
    %9 = arith.addf %7, %8 : vector<2x4x128xf32>
    %c0_8 = arith.constant 0 : index
    %c0_9 = arith.constant 0 : index
    %c0_10 = arith.constant 0 : index
    %10 = vector.load %arg4[%c0_8, %c0_9, %c0_10] : memref<2x4x128xf32, #tpu.memory_space<vmem>>, vector<2x4x128xf32>
    tpu.vector_store %arg4[%c0_8, %c0_9, %c0_10], %9 {strides = array<i32>} : memref<2x4x128xf32, #tpu.memory_space<vmem>>, vector<2x4x128xf32>,
    return
  }
  func.func @transform_0(%arg0: i32, %arg1: i32) -> (i32, i32) {
    %c0_i32 = arith.constant 0 : i32
    %c0_i32_0 = arith.constant 0 : i32
    %c0_i32_1 = arith.constant 0 : i32
    return %c0_i32, %c0_i32_0 : i32, i32
  }
  func.func @transform_1(%arg0: i32, %arg1: i32) -> (i32, i32, i32) {
    %c0_i32 = arith.constant 0 : i32
    %c0_i32_0 = arith.constant 0 : i32
    return %arg0, %c0_i32, %arg1 : i32, i32, i32
  }
  func.func @transform_2(%arg0: i32, %arg1: i32) -> (i32, i32, i32) {
    %c0_i32 = arith.constant 0 : i32
    %c0_i32_0 = arith.constant 0 : i32
    return %arg0, %c0_i32, %arg1 : i32, i32, i32
  }
}

</mosaic_0001>

<llo_original>
// kernel: tpu_custom_call.1
$region0: #{tpu_custom_call.1}
  #allocation0 [shape = 'u32[]', space=smem, size = 0x4, offset = 0x4, fixed_abs, tag = 'smem constant byte address 0x4 - core index']
  #allocation1 [shape = 'u32[144,128]{1,0:T(1,128)}', space=vmem, size = 0x12000, scoped, tag = 'internal scratch']
  #allocation2 [shape = 'f32[1,1]{1,0:T(1,128)S(6)}', space=smem, size = 0x200, scoped, tag = 'scoped memory for tpu_custom_call.1']
  %s0 = inlined_call_operand.<no memory space> [shape: f32[1,1], index: 0, kind: input, shape index: {}]
  %s1 = inlined_call_operand.hbm [shape: f32[2,4,256], index: 1, kind: input, shape index: {}]
  %s2 = inlined_call_operand.hbm [shape: f32[2,4,256], index: 2, kind: output, shape index: {}]
  %s3 = sld [smem:[#allocation0]]
  $region45: #{tpu_custom_call.1} parent=0
    _
  %s5 = ssub.s32 1, %s3
  %s6 = scalar_select 0, %s5, %s3
  %7 = sst [smem:[#allocation2]] %s0
  $region1: #{tpu_custom_call.1} parent=0
    #allocation3 [shape = 'u8[8192]{0}', space=vmem, size = 0x2000, scoped, tag = 'input window, operand 1']
    #allocation4 [shape = 's32[2]{0}', space=sflag, size = 0x8, scoped, tag = 'scoped memory for tpu_custom_call.1']
    #allocation5 [shape = 's32[2]{0}', space=sflag, size = 0x8, scoped, tag = 'scoped memory for tpu_custom_call.1']
    #allocation6 [shape = 'u8[8192]{0}', space=vmem, size = 0x2000, scoped, tag = 'output window, operand 0']
    %8 = vsyncpa [#allocation4], 0
    %s9 = scalar_lea.sflag [#allocation4], 1
    %10 = vsyncpa %s9, 0
    %11 = vsyncpa [#allocation5], 0
    %s12 = scalar_lea.sflag [#allocation5], 1
    %13 = vsyncpa %s12, 0
    loop: start=0, step=1, limit=4
    $region2: #{tpu_custom_call.1} parent=1 // loop_pre_header
      _
    $region3: #{tpu_custom_call.1} parent=1 // loop_header
      %s15 = sphi 0, %s19
      %p16 = scmp.ge.s32.totalorder %s15, 4
      %s22 = sphi 0, %s34
      %s23 = sphi 0, %s30
      %s24 = sphi 0, %s22
      %s25 = sphi 0, %s23
      %s26 = sphi 0, %s24
      %s27 = sphi 0, %s25
      %s35 = sphi 0, %s35
      %s37 = sphi 0, %s35
      %s38 = sphi 0, %s37
      %s52 = sphi 0, %s38
      %s60 = sphi 0, %s62
      %s63 = sphi 0, %s60
      %s64 = sphi 0, %s63
      %s80 = sphi 0, %s64
      %s88 = sphi 0, %s90
      %s91 = sphi 0, %s88
      %s92 = sphi 0, %s91
      %s108 = sphi 0, %s92
    $region4: #{tpu_custom_call.1} parent=1 // loop_header_branch
      %18 = sbr.rel (%p16) target = $region8
    $region5: #{tpu_custom_call.1} parent=1 // loop_body
      %s20 = ssub.s32 %s15, 1
      %s21 = ssub.s32 %s15, 2
      %s28 = sadd.s32 1, %s23
      %p29 = scmp.ge.s32.totalorder %s28, 2
      %s30 = scalar_select %p29, 0, %s28
      %s31 = sadd.s32 1, %s22
      %s32 = scalar_select %p29, %s31, %s22
      %p33 = scmp.ge.s32.totalorder %s32, 1
      %s34 = scalar_select %p33, 0, %s32
      %s36 = sadd.s32 %s35, 1
      %p39 = scmp.eq.s32.totalorder %s15, 1
      %p40 = scmp.ne.s32.totalorder %s35, %s37
      %p41 = scmp.eq.s32.totalorder %s15, 0
      %p42 = por %p40, %p41
      %p43 = scmp.ne.s32.totalorder %s35, %s37
      %p44 = scmp.eq.s32.totalorder %s20, 1
      %p45 = por %p43, %p44
      %p46 = scmp.ne.s32.totalorder %s37, %s38
      %p47 = scmp.eq.s32.totalorder %s20, 0
      %p48 = por %p46, %p47
      %p49 = scmp.ne.s32.totalorder %s37, %s38
      %p50 = scmp.eq.s32.totalorder %s21, 1
      %p51 = por %p49, %p50
      %p53 = scmp.ne.s32.totalorder %s38, %s52
      %p54 = scmp.eq.s32.totalorder %s21, 0
      %p55 = por %p53, %p54
      %s56 = ssub.s32 %s22, %s34
      %s57 = ssub.s32 %s23, %s30
      %s58 = sor.u32 %s56, %s57
      %p59 = scmp.eq.s32.totalorder %s58, 0
      %s61 = sadd.s32 %s60, 1
      %s62 = scalar_select %p59, %s60, %s61
      %p65 = pneg %p59
      %p66 = scmp.eq.s32.totalorder %s15, 1
      %p67 = por %p65, %p66
      %p68 = scmp.ne.s32.totalorder %s60, %s63
      %p69 = scmp.eq.s32.totalorder %s15, 0
      %p70 = por %p68, %p69
      %p71 = scmp.ne.s32.totalorder %s60, %s63
      %p72 = scmp.eq.s32.totalorder %s20, 1
      %p73 = por %p71, %p72
      %p74 = scmp.ne.s32.totalorder %s63, %s64
      %p75 = scmp.eq.s32.totalorder %s20, 0
      %p76 = por %p74, %p75
      %p77 = scmp.ne.s32.totalorder %s63, %s64
      %p78 = scmp.eq.s32.totalorder %s21, 1
      %p79 = por %p77, %p78
      %p81 = scmp.ne.s32.totalorder %s64, %s80
      %p82 = scmp.eq.s32.totalorder %s21, 0
      %p83 = por %p81, %p82
      %s84 = ssub.s32 %s22, %s34
      %s85 = ssub.s32 %s23, %s30
      %s86 = sor.u32 %s84, %s85
      %p87 = scmp.eq.s32.totalorder %s86, 0
      %s89 = sadd.s32 %s88, 1
      %s90 = scalar_select %p87, %s88, %s89
      %p93 = pneg %p87
      %p94 = scmp.eq.s32.totalorder %s15, 1
      %p95 = por %p93, %p94
      %p96 = scmp.ne.s32.totalorder %s88, %s91
      %p97 = scmp.eq.s32.totalorder %s15, 0
      %p98 = por %p96, %p97
      %p99 = scmp.ne.s32.totalorder %s88, %s91
      %p100 = scmp.eq.s32.totalorder %s20, 1
      %p101 = por %p99, %p100
      %p102 = scmp.ne.s32.totalorder %s91, %s92
      %p103 = scmp.eq.s32.totalorder %s20, 0
      %p104 = por %p102, %p103
      %p105 = scmp.ne.s32.totalorder %s91, %s92
      %p106 = scmp.eq.s32.totalorder %s21, 1
      %p107 = por %p105, %p106
      %p109 = scmp.ne.s32.totalorder %s92, %s108
      %p110 = scmp.eq.s32.totalorder %s21, 0
      %p111 = por %p109, %p110
      %p112 = scmp.le.s32.totalorder 1, %s15
      %p113 = scmp.lt.s32.totalorder %s15, 3
      %p114 = pnand %p112, %p113
      %p115 = pneg %p114
      // Predicated region
      $region9: #{tpu_custom_call.1} parent=5 // pred_check
        _
      $region10: #{tpu_custom_call.1} parent=5 // pred_check_branch
        %117 = sbr.rel (%p114) target = $region12
      $region11: #{tpu_custom_call.1} parent=5 // pred_region
        %s118 = ssub.s32 %s15, 1
        // Predicated region
        $region13: #{tpu_custom_call.1} parent=11 // pred_check
          %p119 = pneg %p48
        $region14: #{tpu_custom_call.1} parent=11 // pred_check_branch
          %121 = sbr.rel (%p119) target = $region16
        $region15: #{tpu_custom_call.1} parent=11 // pred_region
          _
        $region16: #{tpu_custom_call.1} parent=11 // pred_fallthru
          _
      $region12: #{tpu_custom_call.1} parent=5 // pred_fallthru
        _
      %p122 = scmp.lt.s32.totalorder %s15, 2
      // Predicated region
      $region17: #{tpu_custom_call.1} parent=5 // pred_check
        %p123 = pneg %p122
      $region18: #{tpu_custom_call.1} parent=5 // pred_check_branch
        %125 = sbr.rel (%p123) target = $region20
      $region19: #{tpu_custom_call.1} parent=5 // pred_region
        // Predicated region
        $region21: #{tpu_custom_call.1} parent=19 // pred_check
          %p126 = pneg %p70
        $region22: #{tpu_custom_call.1} parent=19 // pred_check_branch
          %128 = sbr.rel (%p126) target = $region24
        $region23: #{tpu_custom_call.1} parent=19 // pred_region
          %s129 = sand.u32 %s60, 1
          %s130 = scalar_lea.sflag [#allocation4], %s129
          %s131 = sand.u32 %s60, 1
          %s132 = smul.addr %s131, 8
          %s133 = scalar_lea.vmem [#allocation3], %s132
          %s134 = smul.u32 2, %s22
          %s136 = ssub.s32 128, 128
          %137 = vsyncadd %s130, %s136
          %s138 = smul.addr %s134, 2
          %s139 = sadd.s32 %s23, %s138
          %s140 = smul.addr %s139, 64
          %s141 = scalar_lea.hbm %s1, %s140
          %s142 = sshll.u32 %s133, 4
          %s143 = int_to_ptr.vmem [resolvable:$true] %s142
          %148 = dma.hbm_to_vmem [thread:$0]  %s141, 128, %s143, %s130, 128, 64, 4
        $region24: #{tpu_custom_call.1} parent=19 // pred_fallthru
          _
      $region20: #{tpu_custom_call.1} parent=5 // pred_fallthru
        _
      %p149 = scmp.le.s32.totalorder 1, %s15
      %p150 = scmp.lt.s32.totalorder %s15, 3
      %p151 = pnand %p149, %p150
      %p152 = pneg %p151
      // Predicated region
      $region25: #{tpu_custom_call.1} parent=5 // pred_check
        _
      $region26: #{tpu_custom_call.1} parent=5 // pred_check_branch
        %154 = sbr.rel (%p151) target = $region28
      $region27: #{tpu_custom_call.1} parent=5 // pred_region
        %s155 = ssub.s32 %s15, 1
        %s156 = sand.u32 %s63, 1
        %s157 = scalar_lea.sflag [#allocation4], %s156
        %s158 = sand.u32 %s63, 1
        %s159 = smul.addr %s158, 8
        %s160 = scalar_lea.vmem [#allocation3], %s159
        // Predicated region
        $region29: #{tpu_custom_call.1} parent=27 // pred_check
          %p161 = pneg %p76
        $region30: #{tpu_custom_call.1} parent=27 // pred_check_branch
          %163 = sbr.rel (%p161) target = $region32
        $region31: #{tpu_custom_call.1} parent=27 // pred_region
          %164 = dma.done %s157, 128
        $region32: #{tpu_custom_call.1} parent=27 // pred_fallthru
          _
        %p165 = pneg %p48
        %p166 = pneg %p45
        %s167 = sand.u32 %s63, 1
        %s168 = scalar_lea.sflag [#allocation4], %s167
        %s169 = sand.u32 %s63, 1
        %s170 = smul.addr %s169, 8
        %s171 = scalar_lea.vmem [#allocation3], %s170
        %p172 = pneg %p76
        %p173 = pneg %p73
        %p174 = pneg %p104
        %p175 = pneg %p101
        %s176 = sand.u32 %s91, 1
        %s177 = scalar_lea.sflag [#allocation5], %s176
        %s178 = sand.u32 %s91, 1
        %s179 = smul.addr %s178, 8
        %s180 = scalar_lea.vmem [#allocation6], %s179
        %s181 = smul.u32 2, %s24
        %s182 = smul.u32 2, %s24
        %s183 = sld [smem:[#allocation2]]
        %s184 = smul.f32 %s183, 0.25
        %v185 = vld [vmem:[%s160] sm:$0xf]
        %v186 = vld [vmem:[%s160 + $0x4] sm:$0xf]
        %vm187 = vcmask 1043456
        %v188 = vsel %vm187, %v185, 0.0
        %v189 = vrot.slane %v188, 4
        %v190 = vadd.f32 %v188, %v189
        %v191 = vrot.slane %v190, 2
        %v192 = vadd.f32 %v190, %v191
        %v193 = vrot.slane %v192, 1
        %v194 = vadd.f32 %v192, %v193
        %v195 = vsel %vm187, %v186, 0.0
        %v196 = vrot.slane %v195, 4
        %v197 = vadd.f32 %v195, %v196
        %v198 = vrot.slane %v197, 2
        %v199 = vadd.f32 %v197, %v198
        %v200 = vrot.slane %v199, 1
        %v201 = vadd.f32 %v199, %v200
        %v202 = vstv %s184
        %v203 = vmul.f32 %v202, %v194
        %v204 = vmul.f32 %v202, %v201
        %v205 = vadd.f32 %v185, %v203
        %v206 = vadd.f32 %v186, %v204
        %207 = vst [vmem:[%s180] sm:$0xf] %v205
        %208 = vst [vmem:[%s180 + $0x4] sm:$0xf] %v206
        %s209 = sand.u32 %s91, 1
        %s210 = scalar_lea.sflag [#allocation5], %s209
        %s211 = sand.u32 %s91, 1
        %s212 = smul.addr %s211, 8
        %s213 = scalar_lea.vmem [#allocation6], %s212
        // Predicated region
        $region33: #{tpu_custom_call.1} parent=27 // pred_check
          %p214 = pneg %p101
        $region34: #{tpu_custom_call.1} parent=27 // pred_check_branch
          %216 = sbr.rel (%p214) target = $region36
        $region35: #{tpu_custom_call.1} parent=27 // pred_region
          %s217 = smul.u32 2, %s24
          %s219 = ssub.s32 128, 128
          %220 = vsyncadd %s210, %s219
          %s221 = smul.addr %s217, 2
          %s222 = sadd.s32 %s25, %s221
          %s223 = smul.addr %s222, 64
          %s224 = scalar_lea.hbm %s2, %s223
          %s225 = sshll.u32 %s213, 4
          %s226 = int_to_ptr.vmem [resolvable:$true] %s225
          %231 = dma.vmem_to_hbm [thread:$0]  %s226, 128, %s224, %s210, 64, 128, 4
        $region36: #{tpu_custom_call.1} parent=27 // pred_fallthru
          _
      $region28: #{tpu_custom_call.1} parent=5 // pred_fallthru
        _
      %p232 = scmp.le.s32.totalorder 2, %s15
      // Predicated region
      $region37: #{tpu_custom_call.1} parent=5 // pred_check
        %p233 = pneg %p232
      $region38: #{tpu_custom_call.1} parent=5 // pred_check_branch
        %235 = sbr.rel (%p233) target = $region40
      $region39: #{tpu_custom_call.1} parent=5 // pred_region
        %s236 = ssub.s32 %s15, 2
        // Predicated region
        $region41: #{tpu_custom_call.1} parent=39 // pred_check
          %p237 = pneg %p107
        $region42: #{tpu_custom_call.1} parent=39 // pred_check_branch
          %239 = sbr.rel (%p237) target = $region44
        $region43: #{tpu_custom_call.1} parent=39 // pred_region
          %s240 = sand.u32 %s92, 1
          %s241 = scalar_lea.sflag [#allocation5], %s240
          %s242 = sand.u32 %s92, 1
          %s243 = smul.addr %s242, 8
          %s244 = scalar_lea.vmem [#allocation6], %s243
          %245 = dma.done %s241, 128
        $region44: #{tpu_custom_call.1} parent=39 // pred_fallthru
          _
      $region40: #{tpu_custom_call.1} parent=5 // pred_fallthru
        _
    $region6: #{tpu_custom_call.1} parent=1 // loop_footer
      %s19 = sadd.s32 1, %s15
    $region7: #{tpu_custom_call.1} parent=1 // loop_footer_branch
      %14 = sbr.rel target = $region3
    $region8: #{tpu_custom_call.1} parent=1 // loop_exit
      _
    %246 = vsyncpa [#allocation4], 1
    %s247 = scalar_lea.sflag [#allocation4], 1
    %248 = vsyncpa %s247, 1
    %249 = vsyncpa [#allocation5], 1
    %s250 = scalar_lea.sflag [#allocation5], 1
    %251 = vsyncpa %s250, 1

</llo_original>
